<compile_context>
chip_gen: v7x
topology: tpu7x:2x2x1
jax: 0.10.0
libtpu: 0.0.40
codegen_flags: <defaults>
</compile_context>

<pallas_src>
import jax
import jax.numpy as jnp
from jax.experimental import pallas as pl
from jax.experimental.pallas import tpu as pltpu

EPS = 1e-5

_TR_CAP = 2048    # rows per tile upper bound (diminishing returns beyond this)
_MIN_STEPS = 4    # keep >= this many grid steps so megacore (v7x) can shard


# ----------------------------------------------------------------------------
# Hardware-derived sizing
# ----------------------------------------------------------------------------
def _device_kind():
    try:
        return jax.devices()[0].device_kind.lower()
    except Exception:
        return ""


def _vmem_capacity_bytes():
    # Prefer the trace-time hardware query; fall back to device_kind so
    # v5e/v6e still get 128 MiB-sized tiles if the query is unavailable.
    try:
        cap = int(pltpu.get_tpu_info().vmem_capacity_bytes)
        if cap > 0:
            return cap
    except Exception:
        pass
    kind = _device_kind()
    if "v7" in kind:
        return 64 << 20
    return 128 << 20


def _vmem_budget_and_limit():
    cap = max(16 << 20, min(_vmem_capacity_bytes(), 128 << 20))
    data_budget = int(cap * 0.55)                 # pipelined tiles + temporaries
    vmem_limit = min(int(cap * 0.8), 112 << 20)   # scoped limit with headroom
    return data_budget, vmem_limit


def _supports_bf16_vpu():
    # v6e / v7x have a native bf16 VPU; v5e and older do not.
    kind = _device_kind()
    return ("v6" in kind) or ("v7" in kind)


def _row_tile(R, D, dtype, n_f32_temps):
    """Row tile: large (HBM-roofline friendly), VMEM-budgeted, packed-sublane
    aligned, and small enough to leave >= _MIN_STEPS grid steps for megacore."""
    itemsize = jnp.dtype(dtype).itemsize
    pack = 8 * max(1, 4 // itemsize)   # packed sublanes: 8 f32, 16 bf16, 32 int8
    data_budget, vmem_limit = _vmem_budget_and_limit()

    if R <= pack:
        # Single full-extent block (block dim equal to array dim is allowed).
        return R, vmem_limit

    # Per-row VMEM while pipelined: double-buffered input + output tiles,
    # n_f32_temps full-tile f32 temporaries, ~2 native-width temporaries.
    bytes_per_row = D * (2 * itemsize + 2 * itemsize + n_f32_temps * 4 + 2 * itemsize)
    tr = data_budget // max(bytes_per_row, 1)
    tr = min(tr, _TR_CAP)
    # Megacore: keep at least _MIN_STEPS grid steps when R allows it.
    tr = min(tr, max(-(-R // _MIN_STEPS), pack))
    tr = max((tr // pack) * pack, pack)
    tr = min(tr, R - (R % pack) if R % pack == 0 or R >= pack else R)
    tr = max(tr, pack)
    return tr, vmem_limit


# ----------------------------------------------------------------------------
# Kernels
# ----------------------------------------------------------------------------
def _make_layernorm_kernel(has_bias: bool, d: int, bf16_affine: bool):
    inv_d = 1.0 / float(d)

    def kernel(*refs):
        if has_bias:
            x_ref, w_ref, b_ref, o_ref = refs
        else:
            x_ref, w_ref, o_ref = refs
            b_ref = None

        x = x_ref[...]

        if bf16_affine:
            # Stats in f32; normalize/scale/shift on native (bf16) operands.
            x32 = x.astype(jnp.float32)
            s = jnp.sum(x32, axis=-1, keepdims=True)
            ss = jnp.sum(x32 * x32, axis=-1, keepdims=True)
            mean = s * inv_d
            var = jnp.maximum(ss * inv_d - mean * mean, 0.0)
            inv = jax.lax.rsqrt(var + EPS)
            y = (x - mean.astype(x.dtype)) * inv.astype(x.dtype) * w_ref[...]
            if b_ref is not None:
                y = y + b_ref[...]
            o_ref[...] = y.astype(o_ref.dtype)
        else:
            # All-f32 path, two-pass variance (robust when |mean| >> std).
            x32 = x.astype(jnp.float32)
            mean = jnp.sum(x32, axis=-1, keepdims=True) * inv_d
            xc = x32 - mean
            var = jnp.sum(xc * xc, axis=-1, keepdims=True) * inv_d
            inv = jax.lax.rsqrt(var + EPS)
            y = xc * inv * w_ref[...].astype(jnp.float32)
            if b_ref is not None:
                y = y + b_ref[...].astype(jnp.float32)
            o_ref[...] = y.astype(o_ref.dtype)

    return kernel


# ----------------------------------------------------------------------------
# Wrapper
# ----------------------------------------------------------------------------
def layer_norm(x, weight, bias=None):
    """LayerNorm over the last dimension of x (matches F.layer_norm, eps=1e-5).

    x:      (..., D)
    weight: (D,)
    bias:   (D,) or None
    """
    orig_shape = x.shape
    D = orig_shape[-1]
    assert weight.shape == (D,)
    has_bias = bias is not None

    x2 = x.reshape(-1, D)
    R = x2.shape[0]

    # bf16-affine fast path only on chips with a bf16 VPU and for sub-f32
    # float inputs; v5e and f32 inputs stay on the all-f32 path.
    bf16_affine = (
        jnp.issubdtype(x.dtype, jnp.floating)
        and jnp.dtype(x.dtype).itemsize < 4
        and _supports_bf16_vpu()
    )
    n_f32_temps = 2 if bf16_affine else 3
    TR, vmem_limit = _row_tile(R, D, x.dtype, n_f32_temps)

    # Non-divisible grid: Pallas masks OOB writes on the final partial block,
    # and rows are independent, so no host-side pad/slice is needed.
    grid = (pl.cdiv(R, TR),)

    if bf16_affine:
        w2 = weight.reshape(1, D).astype(x.dtype)
        b2 = bias.reshape(1, D).astype(x.dtype) if has_bias else None
    else:
        w2 = weight.reshape(1, D)
        b2 = bias.reshape(1, D) if has_bias else None

    in_specs = [
        pl.BlockSpec((TR, D), lambda i: (i, 0)),
        pl.BlockSpec((1, D), lambda i: (0, 0)),
    ]
    args = [x2, w2]
    if has_bias:
        in_specs.append(pl.BlockSpec((1, D), lambda i: (0, 0)))
        args.append(b2)

    kernel = _make_layernorm_kernel(has_bias, D, bf16_affine)

    out = pl.pallas_call(
        kernel,
        out_shape=jax.ShapeDtypeStruct((R, D), x.dtype),
        grid_spec=pltpu.PrefetchScalarGridSpec(
            num_scalar_prefetch=0,
            grid=grid,
            in_specs=in_specs,
            out_specs=pl.BlockSpec((TR, D), lambda i: (i, 0)),
        ),
        compiler_params=pltpu.CompilerParams(
            dimension_semantics=("parallel",),
            vmem_limit_bytes=vmem_limit,
        ),
    )(*args)

    return out.reshape(orig_shape)


# ----------------------------------------------------------------------------
# Reference + smoke test
# ----------------------------------------------------------------------------
def layer_norm_ref(x, weight, bias=None):
    xf = x.astype(jnp.float32)
    mean = jnp.mean(xf, axis=-1, keepdims=True)
    var = jnp.mean((xf - mean) ** 2, axis=-1, keepdims=True)
    y = (xf - mean) * jax.lax.rsqrt(var + EPS) * weight.astype(jnp.float32)
    if bias is not None:
        y = y + bias.astype(jnp.float32)
    return y.astype(x.dtype)


if __name__ == "__main__":
    key = jax.random.PRNGKey(0)
    kx, kw, kb, kx2 = jax.random.split(key, 4)

    B, T, D = 2, 8, 32  # batch, seq, hidden (ndim = 32)
    x = jax.random.normal(kx, (B, T, D), dtype=jnp.float32)
    weight = 1.0 + 0.1 * jax.random.normal(kw, (D,), dtype=jnp.float32)
    bias = 0.1 * jax.random.normal(kb, (D,), dtype=jnp.float32)

    # bias=True path (f32)
    out = layer_norm(x, weight, bias)
    jax.block_until_ready(out)
    ref = layer_norm_ref(x, weight, bias)
    assert out.shape == x.shape
    assert jnp.allclose(out, ref, atol=2e-5, rtol=2e-5), "mismatch vs reference"

    # bias=False path (dedicated no-bias kernel)
    out_nb = layer_norm(x, weight, None)
    jax.block_until_ready(out_nb)
    ref_nb = layer_norm_ref(x, weight, None)
    assert jnp.allclose(out_nb, ref_nb, atol=2e-5, rtol=2e-5), "mismatch (no-bias)"

    # ragged row count (R % TR != 0) exercises the masked final-block path
    x_r = jax.random.normal(kx2, (3, 5, D), dtype=jnp.float32)
    out_r = layer_norm(x_r, weight, bias)
    jax.block_until_ready(out_r)
    ref_r = layer_norm_ref(x_r, weight, bias)
    assert out_r.shape == x_r.shape
    assert jnp.allclose(out_r, ref_r, atol=2e-5, rtol=2e-5), "mismatch (ragged rows)"

    # bf16 input (uses the bf16-affine fast path on v6e/v7x, f32 path on v5e)
    x_bf = x.astype(jnp.bfloat16)
    out_bf = layer_norm(x_bf, weight, bias)
    jax.block_until_ready(out_bf)
    ref_bf = layer_norm_ref(x_bf, weight, bias)
    assert out_bf.dtype == jnp.bfloat16
    assert jnp.allclose(out_bf.astype(jnp.float32), ref_bf.astype(jnp.float32),
                        atol=1e-1, rtol=5e-2), "mismatch (bf16)"

    print("KERNEL_OK")
</pallas_src>

<mosaic_0001>
module attributes {stable_mosaic.version = 11 : i64} {
  func.func @kernel(%arg0: i32, %arg1: memref<8x32xf32, #tpu.memory_space<vmem>>, %arg2: memref<1x32xf32, #tpu.memory_space<vmem>>, %arg3: memref<1x32xf32, #tpu.memory_space<vmem>>, %arg4: memref<8x32xf32, #tpu.memory_space<vmem>>) attributes {dimension_semantics = [#tpu.dimension_semantics<parallel>], iteration_bounds = array<i64: 2>, scalar_prefetch = 0 : i64, scratch_operands = 0 : i64, tpu.core_type = #tpu.core_type<tc>, window_params = [{transform_indices = @transform_0, window_bounds = array<i64: 8, 32>}, {pipeline_mode = #tpu.pipeline_mode<synchronous>, transform_indices = @transform_1, window_bounds = array<i64: 1, 32>}, {pipeline_mode = #tpu.pipeline_mode<synchronous>, transform_indices = @transform_2, window_bounds = array<i64: 1, 32>}, {transform_indices = @transform_3, window_bounds = array<i64: 8, 32>}]} {
    %c0 = arith.constant 0 : index
    %c0_0 = arith.constant 0 : index
    %0 = vector.load %arg1[%c0, %c0_0] : memref<8x32xf32, #tpu.memory_space<vmem>>, vector<8x32xf32>
    %cst = arith.constant dense<0.000000e+00> : vector<8xf32>
    %1 = vector.multi_reduction <add>, %0, %cst [1] : vector<8x32xf32> to vector<8xf32>
    %2 = vector.shape_cast %1 : vector<8xf32> to vector<8x1xf32>
    %cst_1 = arith.constant 3.125000e-02 : f32
    %3 = vector.broadcast %cst_1 : f32 to vector<8x1xf32>
    %4 = arith.mulf %2, %3 : vector<8x1xf32>
    %5 = vector.broadcast %4 : vector<8x1xf32> to vector<8x32xf32>
    %6 = arith.subf %0, %5 : vector<8x32xf32>
    %7 = arith.mulf %6, %6 : vector<8x32xf32>
    %cst_2 = arith.constant dense<0.000000e+00> : vector<8xf32>
    %8 = vector.multi_reduction <add>, %7, %cst_2 [1] : vector<8x32xf32> to vector<8xf32>
    %9 = vector.shape_cast %8 : vector<8xf32> to vector<8x1xf32>
    %cst_3 = arith.constant 3.125000e-02 : f32
    %10 = vector.broadcast %cst_3 : f32 to vector<8x1xf32>
    %11 = arith.mulf %9, %10 : vector<8x1xf32>
    %cst_4 = arith.constant 9.99999974E-6 : f32
    %12 = vector.broadcast %cst_4 : f32 to vector<8x1xf32>
    %13 = arith.addf %11, %12 : vector<8x1xf32>
    %14 = math.rsqrt %13 : vector<8x1xf32>
    %15 = vector.broadcast %14 : vector<8x1xf32> to vector<8x32xf32>
    %16 = arith.mulf %6, %15 : vector<8x32xf32>
    %c0_5 = arith.constant 0 : index
    %c0_6 = arith.constant 0 : index
    %17 = vector.load %arg2[%c0_5, %c0_6] : memref<1x32xf32, #tpu.memory_space<vmem>>, vector<1x32xf32>
    %18 = vector.broadcast %17 : vector<1x32xf32> to vector<8x32xf32>
    %19 = arith.mulf %16, %18 : vector<8x32xf32>
    %c0_7 = arith.constant 0 : index
    %c0_8 = arith.constant 0 : index
    %20 = vector.load %arg3[%c0_7, %c0_8] : memref<1x32xf32, #tpu.memory_space<vmem>>, vector<1x32xf32>
    %21 = vector.broadcast %20 : vector<1x32xf32> to vector<8x32xf32>
    %22 = arith.addf %19, %21 : vector<8x32xf32>
    %c0_9 = arith.constant 0 : index
    %c0_10 = arith.constant 0 : index
    %23 = vector.load %arg4[%c0_9, %c0_10] : memref<8x32xf32, #tpu.memory_space<vmem>>, vector<8x32xf32>
    tpu.vector_store %arg4[%c0_9, %c0_10], %22 {strides = array<i32>} : memref<8x32xf32, #tpu.memory_space<vmem>>, vector<8x32xf32>,
    return
  }
  func.func @transform_0(%arg0: i32) -> (i32, i32) {
    %c0_i32 = arith.constant 0 : i32
    %c0_i32_0 = arith.constant 0 : i32
    return %arg0, %c0_i32 : i32, i32
  }
  func.func @transform_1(%arg0: i32) -> (i32, i32) {
    %c0_i32 = arith.constant 0 : i32
    %c0_i32_0 = arith.constant 0 : i32
    %c0_i32_1 = arith.constant 0 : i32
    return %c0_i32, %c0_i32_0 : i32, i32
  }
  func.func @transform_2(%arg0: i32) -> (i32, i32) {
    %c0_i32 = arith.constant 0 : i32
    %c0_i32_0 = arith.constant 0 : i32
    %c0_i32_1 = arith.constant 0 : i32
    return %c0_i32, %c0_i32_0 : i32, i32
  }
  func.func @transform_3(%arg0: i32) -> (i32, i32) {
    %c0_i32 = arith.constant 0 : i32
    %c0_i32_0 = arith.constant 0 : i32
    return %arg0, %c0_i32 : i32, i32
  }
}

</mosaic_0001>

<llo_original>
// kernel: tpu_custom_call.1
$region0: #{tpu_custom_call.1}
  #allocation0 [shape = 'u32[]', space=smem, size = 0x4, offset = 0x4, fixed_abs, tag = 'smem constant byte address 0x4 - core index']
  #allocation1 [shape = 'u32[144,128]{1,0:T(1,128)}', space=vmem, size = 0x12000, scoped, tag = 'internal scratch']
  %s0 = inlined_call_operand.hbm [shape: f32[16,32], index: 0, kind: input, shape index: {}]
  %s1 = inlined_call_operand.hbm [shape: f32[1,32], index: 1, kind: input, shape index: {}]
  %s2 = inlined_call_operand.hbm [shape: f32[1,32], index: 2, kind: input, shape index: {}]
  %s3 = inlined_call_operand.hbm [shape: f32[16,32], index: 3, kind: output, shape index: {}]
  %s4 = sld [smem:[#allocation0]]
  $region57: #{tpu_custom_call.1} parent=0
    _
  %s6 = ssub.s32 1, %s4
  %s7 = scalar_select 0, %s6, %s4
  $region1: #{tpu_custom_call.1} parent=0
    #allocation2 [shape = 'u8[8192]{0}', space=vmem, size = 0x2000, scoped, tag = 'input window, operand 0']
    #allocation3 [shape = 's32[2]{0}', space=sflag, size = 0x8, scoped, tag = 'scoped memory for tpu_custom_call.1']
    #allocation4 [shape = 's32[2]{0}', space=sflag, size = 0x8, scoped, tag = 'scoped memory for tpu_custom_call.1']
    #allocation5 [shape = 'u8[512]{0}', space=vmem, size = 0x400, scoped, tag = 'input window, operand 1, single buffered']
    #allocation6 [shape = 's32[1]{0}', space=sflag, size = 0x4, scoped, tag = 'scoped memory for tpu_custom_call.1']
    #allocation7 [shape = 'u8[512]{0}', space=vmem, size = 0x400, scoped, tag = 'input window, operand 2, single buffered']
    #allocation8 [shape = 'u8[8192]{0}', space=vmem, size = 0x2000, scoped, tag = 'output window, operand 0']
    %8 = vsyncpa [#allocation3], 0
    %s9 = scalar_lea.sflag [#allocation3], 1
    %10 = vsyncpa %s9, 0
    %11 = vsyncpa [#allocation6], 0
    %12 = vsyncpa [#allocation4], 0
    %s13 = scalar_lea.sflag [#allocation4], 1
    %14 = vsyncpa %s13, 0
    loop: start=0, step=1, limit=4
    $region2: #{tpu_custom_call.1} parent=1 // loop_pre_header
      _
    $region3: #{tpu_custom_call.1} parent=1 // loop_header
      %s16 = sphi 0, %s20
      %p17 = scmp.ge.s32.totalorder %s16, 4
      %s26 = sphi 0, %s28
      %s29 = sphi 0, %s26
      %s30 = sphi 0, %s29
      %s46 = sphi 0, %s30
      %s50 = sphi 0, %s50
      %s52 = sphi 0, %s50
      %s53 = sphi 0, %s52
      %s67 = sphi 0, %s53
      %s71 = sphi 0, %s71
      %s73 = sphi 0, %s71
      %s74 = sphi 0, %s73
      %s88 = sphi 0, %s74
      %s94 = sphi 0, %s96
      %s97 = sphi 0, %s94
      %s98 = sphi 0, %s97
      %s114 = sphi 0, %s98
    $region4: #{tpu_custom_call.1} parent=1 // loop_header_branch
      %19 = sbr.rel (%p17) target = $region8
    $region5: #{tpu_custom_call.1} parent=1 // loop_body
      %s21 = ssub.s32 %s16, 1
      %s22 = ssub.s32 %s16, 2
      %s23 = sadd.s32 %s16, 1
      %s24 = ssub.s32 %s16, %s23
      %p25 = scmp.eq.s32.totalorder %s24, 0
      %s27 = sadd.s32 %s26, 1
      %s28 = scalar_select %p25, %s26, %s27
      %p31 = pneg %p25
      %p32 = scmp.eq.s32.totalorder %s16, 1
      %p33 = por %p31, %p32
      %p34 = scmp.ne.s32.totalorder %s26, %s29
      %p35 = scmp.eq.s32.totalorder %s16, 0
      %p36 = por %p34, %p35
      %p37 = scmp.ne.s32.totalorder %s26, %s29
      %p38 = scmp.eq.s32.totalorder %s21, 1
      %p39 = por %p37, %p38
      %p40 = scmp.ne.s32.totalorder %s29, %s30
      %p41 = scmp.eq.s32.totalorder %s21, 0
      %p42 = por %p40, %p41
      %p43 = scmp.ne.s32.totalorder %s29, %s30
      %p44 = scmp.eq.s32.totalorder %s22, 1
      %p45 = por %p43, %p44
      %p47 = scmp.ne.s32.totalorder %s30, %s46
      %p48 = scmp.eq.s32.totalorder %s22, 0
      %p49 = por %p47, %p48
      %s51 = sadd.s32 %s50, 1
      %p54 = scmp.eq.s32.totalorder %s16, 1
      %p55 = scmp.ne.s32.totalorder %s50, %s52
      %p56 = scmp.eq.s32.totalorder %s16, 0
      %p57 = por %p55, %p56
      %p58 = scmp.ne.s32.totalorder %s50, %s52
      %p59 = scmp.eq.s32.totalorder %s21, 1
      %p60 = por %p58, %p59
      %p61 = scmp.ne.s32.totalorder %s52, %s53
      %p62 = scmp.eq.s32.totalorder %s21, 0
      %p63 = por %p61, %p62
      %p64 = scmp.ne.s32.totalorder %s52, %s53
      %p65 = scmp.eq.s32.totalorder %s22, 1
      %p66 = por %p64, %p65
      %p68 = scmp.ne.s32.totalorder %s53, %s67
      %p69 = scmp.eq.s32.totalorder %s22, 0
      %p70 = por %p68, %p69
      %s72 = sadd.s32 %s71, 1
      %p75 = scmp.eq.s32.totalorder %s16, 1
      %p76 = scmp.ne.s32.totalorder %s71, %s73
      %p77 = scmp.eq.s32.totalorder %s16, 0
      %p78 = por %p76, %p77
      %p79 = scmp.ne.s32.totalorder %s71, %s73
      %p80 = scmp.eq.s32.totalorder %s21, 1
      %p81 = por %p79, %p80
      %p82 = scmp.ne.s32.totalorder %s73, %s74
      %p83 = scmp.eq.s32.totalorder %s21, 0
      %p84 = por %p82, %p83
      %p85 = scmp.ne.s32.totalorder %s73, %s74
      %p86 = scmp.eq.s32.totalorder %s22, 1
      %p87 = por %p85, %p86
      %p89 = scmp.ne.s32.totalorder %s74, %s88
      %p90 = scmp.eq.s32.totalorder %s22, 0
      %p91 = por %p89, %p90
      %s92 = ssub.s32 %s16, %s23
      %p93 = scmp.eq.s32.totalorder %s92, 0
      %s95 = sadd.s32 %s94, 1
      %s96 = scalar_select %p93, %s94, %s95
      %p99 = pneg %p93
      %p100 = scmp.eq.s32.totalorder %s16, 1
      %p101 = por %p99, %p100
      %p102 = scmp.ne.s32.totalorder %s94, %s97
      %p103 = scmp.eq.s32.totalorder %s16, 0
      %p104 = por %p102, %p103
      %p105 = scmp.ne.s32.totalorder %s94, %s97
      %p106 = scmp.eq.s32.totalorder %s21, 1
      %p107 = por %p105, %p106
      %p108 = scmp.ne.s32.totalorder %s97, %s98
      %p109 = scmp.eq.s32.totalorder %s21, 0
      %p110 = por %p108, %p109
      %p111 = scmp.ne.s32.totalorder %s97, %s98
      %p112 = scmp.eq.s32.totalorder %s22, 1
      %p113 = por %p111, %p112
      %p115 = scmp.ne.s32.totalorder %s98, %s114
      %p116 = scmp.eq.s32.totalorder %s22, 0
      %p117 = por %p115, %p116
      %p118 = scmp.le.s32.totalorder 1, %s16
      %p119 = scmp.lt.s32.totalorder %s16, 3
      %p120 = pnand %p118, %p119
      %p121 = pneg %p120
      // Predicated region
      $region9: #{tpu_custom_call.1} parent=5 // pred_check
        _
      $region10: #{tpu_custom_call.1} parent=5 // pred_check_branch
        %123 = sbr.rel (%p120) target = $region12
      $region11: #{tpu_custom_call.1} parent=5 // pred_region
        %s124 = ssub.s32 %s16, 1
        // Predicated region
        $region13: #{tpu_custom_call.1} parent=11 // pred_check
          %p125 = pneg %p63
        $region14: #{tpu_custom_call.1} parent=11 // pred_check_branch
          %127 = sbr.rel (%p125) target = $region16
        $region15: #{tpu_custom_call.1} parent=11 // pred_region
          %s129 = ssub.s32 16, 16
          %130 = vsyncadd [#allocation6], %s129
          %s132 = sshll.u32 [#allocation5], 4
          %s133 = int_to_ptr.vmem [resolvable:$true] %s132
          %135 = dma.hbm_to_vmem [thread:$0]  %s1, 16, %s133, [#allocation6]
        $region16: #{tpu_custom_call.1} parent=11 // pred_fallthru
          _
        // Predicated region
        $region17: #{tpu_custom_call.1} parent=11 // pred_check
          %p136 = pneg %p84
        $region18: #{tpu_custom_call.1} parent=11 // pred_check_branch
          %138 = sbr.rel (%p136) target = $region20
        $region19: #{tpu_custom_call.1} parent=11 // pred_region
          %s140 = ssub.s32 16, 16
          %141 = vsyncadd [#allocation6], %s140
          %s143 = sshll.u32 [#allocation7], 4
          %s144 = int_to_ptr.vmem [resolvable:$true] %s143
          %146 = dma.hbm_to_vmem [thread:$0]  %s2, 16, %s144, [#allocation6]
        $region20: #{tpu_custom_call.1} parent=11 // pred_fallthru
          _
      $region12: #{tpu_custom_call.1} parent=5 // pred_fallthru
        _
      %p147 = scmp.lt.s32.totalorder %s16, 2
      // Predicated region
      $region21: #{tpu_custom_call.1} parent=5 // pred_check
        %p148 = pneg %p147
      $region22: #{tpu_custom_call.1} parent=5 // pred_check_branch
        %150 = sbr.rel (%p148) target = $region24
      $region23: #{tpu_custom_call.1} parent=5 // pred_region
        // Predicated region
        $region25: #{tpu_custom_call.1} parent=23 // pred_check
          %p151 = pneg %p36
        $region26: #{tpu_custom_call.1} parent=23 // pred_check_branch
          %153 = sbr.rel (%p151) target = $region28
        $region27: #{tpu_custom_call.1} parent=23 // pred_region
          %s154 = sand.u32 %s26, 1
          %s155 = scalar_lea.sflag [#allocation3], %s154
          %s156 = sand.u32 %s26, 1
          %s157 = smul.addr %s156, 8
          %s158 = scalar_lea.vmem [#allocation2], %s157
          %s160 = ssub.s32 128, 128
          %161 = vsyncadd %s155, %s160
          %s162 = smul.addr %s16, 128
          %s163 = scalar_lea.hbm %s0, %s162
          %s165 = sshll.u32 %s158, 4
          %s166 = int_to_ptr.vmem [resolvable:$true] %s165
          %168 = dma.hbm_to_vmem [thread:$0]  %s163, 128, %s166, %s155
        $region28: #{tpu_custom_call.1} parent=23 // pred_fallthru
          _
      $region24: #{tpu_custom_call.1} parent=5 // pred_fallthru
        _
      %p169 = scmp.le.s32.totalorder 1, %s16
      %p170 = scmp.lt.s32.totalorder %s16, 3
      %p171 = pnand %p169, %p170
      %p172 = pneg %p171
      // Predicated region
      $region29: #{tpu_custom_call.1} parent=5 // pred_check
        _
      $region30: #{tpu_custom_call.1} parent=5 // pred_check_branch
        %174 = sbr.rel (%p171) target = $region32
      $region31: #{tpu_custom_call.1} parent=5 // pred_region
        %s175 = ssub.s32 %s16, 1
        %s176 = sand.u32 %s29, 1
        %s177 = scalar_lea.sflag [#allocation3], %s176
        %s178 = sand.u32 %s29, 1
        %s179 = smul.addr %s178, 8
        %s180 = scalar_lea.vmem [#allocation2], %s179
        // Predicated region
        $region33: #{tpu_custom_call.1} parent=31 // pred_check
          %p181 = pneg %p42
        $region34: #{tpu_custom_call.1} parent=31 // pred_check_branch
          %183 = sbr.rel (%p181) target = $region36
        $region35: #{tpu_custom_call.1} parent=31 // pred_region
          %184 = dma.done %s177, 128
        $region36: #{tpu_custom_call.1} parent=31 // pred_fallthru
          _
        // Predicated region
        $region37: #{tpu_custom_call.1} parent=31 // pred_check
          %p185 = pneg %p63
        $region38: #{tpu_custom_call.1} parent=31 // pred_check_branch
          %187 = sbr.rel (%p185) target = $region40
        $region39: #{tpu_custom_call.1} parent=31 // pred_region
          %188 = dma.done [#allocation6], 16
        $region40: #{tpu_custom_call.1} parent=31 // pred_fallthru
          _
        // Predicated region
        $region41: #{tpu_custom_call.1} parent=31 // pred_check
          %p189 = pneg %p84
        $region42: #{tpu_custom_call.1} parent=31 // pred_check_branch
          %191 = sbr.rel (%p189) target = $region44
        $region43: #{tpu_custom_call.1} parent=31 // pred_region
          %192 = dma.done [#allocation6], 16
        $region44: #{tpu_custom_call.1} parent=31 // pred_fallthru
          _
        %s193 = sand.u32 %s29, 1
        %s194 = scalar_lea.sflag [#allocation3], %s193
        %s195 = sand.u32 %s29, 1
        %s196 = smul.addr %s195, 8
        %s197 = scalar_lea.vmem [#allocation2], %s196
        %p198 = pneg %p42
        %p199 = pneg %p39
        %p200 = pneg %p63
        %p201 = pneg %p60
        %p202 = pneg %p84
        %p203 = pneg %p81
        %p204 = pneg %p110
        %p205 = pneg %p107
        %s206 = sand.u32 %s97, 1
        %s207 = scalar_lea.sflag [#allocation4], %s206
        %s208 = sand.u32 %s97, 1
        %s209 = smul.addr %s208, 8
        %s210 = scalar_lea.vmem [#allocation8], %s209
        %v211 = vld [vmem:[%s180] sm:$0xff]
        %vm212 = vcmask 261120
        %v213 = vsel %vm212, %v211, 0.0
        %214 = vadd.xlane.f32.xlu0 %v213
        %v215 = vpop.xlane.xlu0 %214
        %v216 = vmul.f32 %v215, 0.03125
        %v217 = vsub.f32 %v211, %v216
        %v218 = vmul.f32 %v217, %v217
        %v219 = vsel %vm212, %v218, 0.0
        %220 = vadd.xlane.f32.xlu0 %v219
        %v221 = vpop.xlane.xlu0 %220
        %v222 = vmul.f32 %v221, 0.03125
        %v223 = vadd.f32 %v222, 1e-05
        %v224 = vrsqrt.pop %v223
        %v225 = vmul.f32 %v217, %v224
        %v226 = vld [vmem:[#allocation5] sm:$0x1]
        %v228 = vlaneseq
        %v229 = vshrl.u32 %v228, 7
        %v230 = vsub.s32 0, %v229
        %v231 = vrot.slane %v226, %v230
        %v233 = vmul.f32 %v225, %v231
        %v234 = vld [vmem:[#allocation7] sm:$0x1]
        %v236 = vlaneseq
        %v237 = vshrl.u32 %v236, 7
        %v238 = vsub.s32 0, %v237
        %v239 = vrot.slane %v234, %v238
        %v241 = vadd.f32 %v233, %v239
        %242 = vst.msk [vmem:[%s210] sm:$0xff] %vm212, %v241
        %s243 = sand.u32 %s97, 1
        %s244 = scalar_lea.sflag [#allocation4], %s243
        %s245 = sand.u32 %s97, 1
        %s246 = smul.addr %s245, 8
        %s247 = scalar_lea.vmem [#allocation8], %s246
        // Predicated region
        $region45: #{tpu_custom_call.1} parent=31 // pred_check
          %p248 = pneg %p107
        $region46: #{tpu_custom_call.1} parent=31 // pred_check_branch
          %250 = sbr.rel (%p248) target = $region48
        $region47: #{tpu_custom_call.1} parent=31 // pred_region
          %s252 = ssub.s32 128, 128
          %253 = vsyncadd %s244, %s252
          %s254 = smul.addr %s21, 128
          %s255 = scalar_lea.hbm %s3, %s254
          %s257 = sshll.u32 %s247, 4
          %s258 = int_to_ptr.vmem [resolvable:$true] %s257
          %260 = dma.vmem_to_hbm [thread:$0]  %s258, 128, %s255, %s244
        $region48: #{tpu_custom_call.1} parent=31 // pred_fallthru
          _
      $region32: #{tpu_custom_call.1} parent=5 // pred_fallthru
        _
      %p261 = scmp.le.s32.totalorder 2, %s16
      // Predicated region
      $region49: #{tpu_custom_call.1} parent=5 // pred_check
        %p262 = pneg %p261
      $region50: #{tpu_custom_call.1} parent=5 // pred_check_branch
        %264 = sbr.rel (%p262) target = $region52
      $region51: #{tpu_custom_call.1} parent=5 // pred_region
        %s265 = ssub.s32 %s16, 2
        // Predicated region
        $region53: #{tpu_custom_call.1} parent=51 // pred_check
          %p266 = pneg %p113
        $region54: #{tpu_custom_call.1} parent=51 // pred_check_branch
          %268 = sbr.rel (%p266) target = $region56
        $region55: #{tpu_custom_call.1} parent=51 // pred_region
          %s269 = sand.u32 %s98, 1
          %s270 = scalar_lea.sflag [#allocation4], %s269
          %s271 = sand.u32 %s98, 1
          %s272 = smul.addr %s271, 8
          %s273 = scalar_lea.vmem [#allocation8], %s272
          %274 = dma.done %s270, 128
        $region56: #{tpu_custom_call.1} parent=51 // pred_fallthru
          _
      $region52: #{tpu_custom_call.1} parent=5 // pred_fallthru
        _
    $region6: #{tpu_custom_call.1} parent=1 // loop_footer
      %s20 = sadd.s32 1, %s16
    $region7: #{tpu_custom_call.1} parent=1 // loop_footer_branch
      %15 = sbr.rel target = $region3
    $region8: #{tpu_custom_call.1} parent=1 // loop_exit
      _
    %275 = vsyncpa [#allocation3], 1
    %s276 = scalar_lea.sflag [#allocation3], 1
    %277 = vsyncpa %s276, 1
    %278 = vsyncpa [#allocation6], 1
    %279 = vsyncpa [#allocation4], 1
    %s280 = scalar_lea.sflag [#allocation4], 1
    %281 = vsyncpa %s280, 1

</llo_original>
